<compile_context>
chip_gen: v7x
topology: tpu7x:2x2x1
jax: 0.10.0
libtpu: 0.0.40
codegen_flags: <defaults>
</compile_context>

<pallas_src>
import jax
import jax.numpy as jnp
from jax.experimental import pallas as pl
from jax.experimental.pallas import tpu as pltpu


def anfis_kernel(x_ref, a_ref, b_ref, rw_ref, dzw_ref, dzb_ref, out_ref):
    """One batch tile, transposed layout (rules on sublanes, batch on lanes).

    x_ref   : (I, TB)  f32   x transposed (feature-major)
    a_ref   : (R, I)   f32   (1/sigma).T
    b_ref   : (R, I)   f32   (mu/sigma).T
    rw_ref  : (R, R)   f32   rule_weights.weight (PyTorch layout)
    dzw_ref : (R, 1)   f32   defuzzify.weight transposed
    dzb_ref : (1,)     f32   defuzzify.bias (SMEM scalar)
    out_ref : (1, TB)  f32   lane-dense output tile
    """
    x = x_ref[...]                       # (I, TB)
    a = a_ref[...]                       # (R, I)
    b = b_ref[...]                       # (R, I)
    n_inputs = x.shape[0]
    R = a.shape[0]
    TB = x.shape[1]

    # s[r, t] = sum_i ((x[t, i] - mu[i, r]) / sigma[i, r])**2
    # z_i = x_i * (1/sigma_i) - mu_i/sigma_i, accumulated as a sum of squares so the
    # product of Gaussians collapses to a single exp.
    s = jnp.zeros((R, TB), dtype=jnp.float32)
    for i in range(n_inputs):            # small static unroll (VPU only)
        z = x[i:i + 1, :] * a[:, i:i + 1] - b[:, i:i + 1]     # (1,TB)*(R,1)-(R,1) -> (R,TB)
        s = s + z * z
    firing = jnp.exp(-0.5 * s)           # (R, TB)

    # logits_t[j, t] = sum_k W[j, k] * firing_t[k, t]  ==  (firing @ W.T).T
    logits = jnp.dot(rw_ref[...], firing, preferred_element_type=jnp.float32)  # (R, TB)

    # softmax over the rule axis (sublanes)
    m = jnp.max(logits, axis=0, keepdims=True)                # (1, TB)
    e = jnp.exp(logits - m)                                   # (R, TB)
    denom = jnp.sum(e, axis=0, keepdims=True)                 # (1, TB)
    inv = pl.reciprocal(denom, approx=True)                   # EUP vrcp
    inv = inv * (2.0 - denom * inv)                           # one Newton step -> f32 accurate
    weighted = e * inv * firing                               # (R, TB)

    # defuzzify: out[t] = sum_r dzw[r] * weighted[r, t] + bias   (VPU mul + sublane reduce,
    # avoids an N=1 MXU matmul)
    out = jnp.sum(weighted * dzw_ref[...], axis=0, keepdims=True)   # (1, TB)
    out_ref[...] = out + dzb_ref[0]


@jax.jit
def anfis_forward(x, mu, sigma, rw_w, dz_w, dz_b):
    """x: (B, n_inputs); returns (B, 1) float32, matching the PyTorch forward."""
    B, n_inputs = x.shape
    R = mu.shape[1]

    # Batch tile: multiple of 128 lanes, capped at 1024 rows per grid step.
    lane = 128
    b128 = ((B + lane - 1) // lane) * lane
    tile_b = min(b128, 1024)
    b_pad = ((b128 + tile_b - 1) // tile_b) * tile_b
    grid = (b_pad // tile_b,)

    # Wrapper-side (loop-invariant) parameter folding / transposes.
    x_t = jnp.pad(x.astype(jnp.float32).T, ((0, 0), (0, b_pad - B)))   # (I, B_pad)
    inv_sigma = 1.0 / sigma.astype(jnp.float32)
    a_t = inv_sigma.T                                                  # (R, I)
    b_t = (mu.astype(jnp.float32) * inv_sigma).T                       # (R, I)
    rw = rw_w.astype(jnp.float32)                                      # (R, R)
    dzw_t = dz_w.astype(jnp.float32).T                                 # (R, 1)
    dzb = dz_b.astype(jnp.float32).reshape(-1)                         # (1,)

    out_flat = pl.pallas_call(
        anfis_kernel,
        out_shape=jax.ShapeDtypeStruct((1, b_pad), jnp.float32),
        grid=grid,
        in_specs=[
            pl.BlockSpec((n_inputs, tile_b), lambda i: (0, i)),        # x (pipelined)
            pl.BlockSpec((R, n_inputs), lambda i: (0, 0)),             # 1/sigma^T
            pl.BlockSpec((R, n_inputs), lambda i: (0, 0)),             # mu/sigma^T
            pl.BlockSpec((R, R), lambda i: (0, 0)),                    # rule weights
            pl.BlockSpec((R, 1), lambda i: (0, 0)),                    # defuzz weight^T
            pl.BlockSpec(memory_space=pltpu.MemorySpace.SMEM),         # bias scalar
        ],
        out_specs=pl.BlockSpec((1, tile_b), lambda i: (0, i)),         # lane-dense output
        compiler_params=pltpu.CompilerParams(
            dimension_semantics=("parallel",)),
    )(x_t, a_t, b_t, rw, dzw_t, dzb)

    return out_flat[0, :B][:, None]                                    # (B, 1)


def anfis_reference(x, mu, sigma, rw_w, dz_w, dz_b):
    """Pure-JAX reference mirroring the PyTorch forward."""
    xe = x[:, :, None]                                                 # (B, I, 1)
    membership = jnp.exp(-0.5 * ((xe - mu[None]) / sigma[None]) ** 2)  # (B, I, R)
    firing = jnp.prod(membership, axis=1)                              # (B, R)
    logits = firing @ rw_w.T                                           # (B, R)
    normalized = jax.nn.softmax(logits, axis=1)
    return (normalized * firing) @ dz_w.T + dz_b                       # (B, 1)


if __name__ == "__main__":
    n_inputs, n_rules, batch = 4, 16, 8

    key = jax.random.PRNGKey(0)
    k_mu, k_rw, k_dzw, k_dzb, k_x, k_x2 = jax.random.split(key, 6)

    # Parameter init matching nn.Module shapes (deterministic, synthetic).
    mu = jax.random.uniform(k_mu, (n_inputs, n_rules), jnp.float32, -1.0, 1.0)
    sigma = jnp.ones((n_inputs, n_rules), jnp.float32)
    bound = 1.0 / (n_rules ** 0.5)
    rw_w = jax.random.uniform(k_rw, (n_rules, n_rules), jnp.float32, -bound, bound)
    dz_w = jax.random.uniform(k_dzw, (1, n_rules), jnp.float32, -bound, bound)
    dz_b = jax.random.uniform(k_dzb, (1, 1), jnp.float32, -bound, bound)

    # Small batch (single grid step, padded to 128 lanes).
    x = jax.random.normal(k_x, (batch, n_inputs), jnp.float32)
    out = jax.block_until_ready(anfis_forward(x, mu, sigma, rw_w, dz_w, dz_b))
    ref = anfis_reference(x, mu, sigma, rw_w, dz_w, dz_b)
    assert out.shape == (batch, 1), out.shape
    assert jnp.allclose(out, ref, atol=1e-5, rtol=1e-5), (out, ref)

    # Larger batch exercising multiple grid steps + tail padding.
    batch2 = 2500
    x2 = jax.random.normal(k_x2, (batch2, n_inputs), jnp.float32)
    out2 = jax.block_until_ready(anfis_forward(x2, mu, sigma, rw_w, dz_w, dz_b))
    ref2 = anfis_reference(x2, mu, sigma, rw_w, dz_w, dz_b)
    assert out2.shape == (batch2, 1), out2.shape
    assert jnp.allclose(out2, ref2, atol=1e-5, rtol=1e-5)

    print("KERNEL_OK")
</pallas_src>

<mosaic_0001>
module attributes {stable_mosaic.version = 11 : i64} {
  func.func @anfis_kernel(%arg0: i32, %arg1: memref<4x128xf32, #tpu.memory_space<vmem>>, %arg2: memref<16x4xf32, #tpu.memory_space<vmem>>, %arg3: memref<16x4xf32, #tpu.memory_space<vmem>>, %arg4: memref<16x16xf32, #tpu.memory_space<vmem>>, %arg5: memref<16x1xf32, #tpu.memory_space<vmem>>, %arg6: memref<1xf32, #tpu.memory_space<smem>>, %arg7: memref<1x128xf32, #tpu.memory_space<vmem>>) attributes {dimension_semantics = [#tpu.dimension_semantics<parallel>], iteration_bounds = array<i64: 1>, scalar_prefetch = 0 : i64, scratch_operands = 0 : i64, tpu.core_type = #tpu.core_type<tc>, window_params = [{transform_indices = @transform_0, window_bounds = array<i64: 4, 128>}, {pipeline_mode = #tpu.pipeline_mode<synchronous>, transform_indices = @transform_1, window_bounds = array<i64: 16, 4>}, {pipeline_mode = #tpu.pipeline_mode<synchronous>, transform_indices = @transform_2, window_bounds = array<i64: 16, 4>}, {pipeline_mode = #tpu.pipeline_mode<synchronous>, transform_indices = @transform_3, window_bounds = array<i64: 16, 16>}, {pipeline_mode = #tpu.pipeline_mode<synchronous>, transform_indices = @transform_4, window_bounds = array<i64: 16, 1>}, {transform_indices = @transform_5, window_bounds = array<i64: 1>}, {transform_indices = @transform_6, window_bounds = array<i64: 1, 128>}]} {
    %c0 = arith.constant 0 : index
    %c0_0 = arith.constant 0 : index
    %0 = vector.load %arg1[%c0, %c0_0] : memref<4x128xf32, #tpu.memory_space<vmem>>, vector<4x128xf32>
    %c0_1 = arith.constant 0 : index
    %c0_2 = arith.constant 0 : index
    %1 = vector.load %arg2[%c0_1, %c0_2] : memref<16x4xf32, #tpu.memory_space<vmem>>, vector<16x4xf32>
    %c0_3 = arith.constant 0 : index
    %c0_4 = arith.constant 0 : index
    %2 = vector.load %arg3[%c0_3, %c0_4] : memref<16x4xf32, #tpu.memory_space<vmem>>, vector<16x4xf32>
    %cst = arith.constant 0.000000e+00 : f32
    %3 = vector.broadcast %cst : f32 to vector<16x128xf32>
    %4 = vector.extract_strided_slice %0 {offsets = [0, 0], sizes = [1, 128], strides = [1, 1]} : vector<4x128xf32> to vector<1x128xf32>
    %5 = vector.extract_strided_slice %1 {offsets = [0, 0], sizes = [16, 1], strides = [1, 1]} : vector<16x4xf32> to vector<16x1xf32>
    %6 = vector.broadcast %4 : vector<1x128xf32> to vector<16x128xf32>
    %7 = vector.broadcast %5 : vector<16x1xf32> to vector<16x128xf32>
    %8 = arith.mulf %6, %7 : vector<16x128xf32>
    %9 = vector.extract_strided_slice %2 {offsets = [0, 0], sizes = [16, 1], strides = [1, 1]} : vector<16x4xf32> to vector<16x1xf32>
    %10 = vector.broadcast %9 : vector<16x1xf32> to vector<16x128xf32>
    %11 = arith.subf %8, %10 : vector<16x128xf32>
    %12 = arith.mulf %11, %11 : vector<16x128xf32>
    %13 = arith.addf %3, %12 : vector<16x128xf32>
    %14 = vector.extract_strided_slice %0 {offsets = [1, 0], sizes = [1, 128], strides = [1, 1]} : vector<4x128xf32> to vector<1x128xf32>
    %15 = vector.extract_strided_slice %1 {offsets = [0, 1], sizes = [16, 1], strides = [1, 1]} : vector<16x4xf32> to vector<16x1xf32>
    %16 = vector.broadcast %14 : vector<1x128xf32> to vector<16x128xf32>
    %17 = vector.broadcast %15 : vector<16x1xf32> to vector<16x128xf32>
    %18 = arith.mulf %16, %17 : vector<16x128xf32>
    %19 = vector.extract_strided_slice %2 {offsets = [0, 1], sizes = [16, 1], strides = [1, 1]} : vector<16x4xf32> to vector<16x1xf32>
    %20 = vector.broadcast %19 : vector<16x1xf32> to vector<16x128xf32>
    %21 = arith.subf %18, %20 : vector<16x128xf32>
    %22 = arith.mulf %21, %21 : vector<16x128xf32>
    %23 = arith.addf %13, %22 : vector<16x128xf32>
    %24 = vector.extract_strided_slice %0 {offsets = [2, 0], sizes = [1, 128], strides = [1, 1]} : vector<4x128xf32> to vector<1x128xf32>
    %25 = vector.extract_strided_slice %1 {offsets = [0, 2], sizes = [16, 1], strides = [1, 1]} : vector<16x4xf32> to vector<16x1xf32>
    %26 = vector.broadcast %24 : vector<1x128xf32> to vector<16x128xf32>
    %27 = vector.broadcast %25 : vector<16x1xf32> to vector<16x128xf32>
    %28 = arith.mulf %26, %27 : vector<16x128xf32>
    %29 = vector.extract_strided_slice %2 {offsets = [0, 2], sizes = [16, 1], strides = [1, 1]} : vector<16x4xf32> to vector<16x1xf32>
    %30 = vector.broadcast %29 : vector<16x1xf32> to vector<16x128xf32>
    %31 = arith.subf %28, %30 : vector<16x128xf32>
    %32 = arith.mulf %31, %31 : vector<16x128xf32>
    %33 = arith.addf %23, %32 : vector<16x128xf32>
    %34 = vector.extract_strided_slice %0 {offsets = [3, 0], sizes = [1, 128], strides = [1, 1]} : vector<4x128xf32> to vector<1x128xf32>
    %35 = vector.extract_strided_slice %1 {offsets = [0, 3], sizes = [16, 1], strides = [1, 1]} : vector<16x4xf32> to vector<16x1xf32>
    %36 = vector.broadcast %34 : vector<1x128xf32> to vector<16x128xf32>
    %37 = vector.broadcast %35 : vector<16x1xf32> to vector<16x128xf32>
    %38 = arith.mulf %36, %37 : vector<16x128xf32>
    %39 = vector.extract_strided_slice %2 {offsets = [0, 3], sizes = [16, 1], strides = [1, 1]} : vector<16x4xf32> to vector<16x1xf32>
    %40 = vector.broadcast %39 : vector<16x1xf32> to vector<16x128xf32>
    %41 = arith.subf %38, %40 : vector<16x128xf32>
    %42 = arith.mulf %41, %41 : vector<16x128xf32>
    %43 = arith.addf %33, %42 : vector<16x128xf32>
    %cst_5 = arith.constant -5.000000e-01 : f32
    %44 = vector.broadcast %cst_5 : f32 to vector<16x128xf32>
    %45 = arith.mulf %44, %43 : vector<16x128xf32>
    %46 = math.exp %45 : vector<16x128xf32>
    %c0_6 = arith.constant 0 : index
    %c0_7 = arith.constant 0 : index
    %47 = vector.load %arg4[%c0_6, %c0_7] : memref<16x16xf32, #tpu.memory_space<vmem>>, vector<16x16xf32>
    %cst_8 = arith.constant dense<0.000000e+00> : vector<16x128xf32>
    %48 = tpu.matmul %47, %46, %cst_8 {dimension_numbers = #tpu.dot_dimension_numbers<[1], [0], [0], [1], [0, 0, 1, 1], [], []>} : vector<16x16xf32>, vector<16x128xf32>, vector<16x128xf32> -> vector<16x128xf32>
    %cst_9 = arith.constant dense<0xFF800000> : vector<128xf32>
    %49 = vector.multi_reduction <maximumf>, %48, %cst_9 [0] : vector<16x128xf32> to vector<128xf32>
    %50 = vector.shape_cast %49 : vector<128xf32> to vector<1x128xf32>
    %51 = vector.broadcast %50 : vector<1x128xf32> to vector<16x128xf32>
    %52 = arith.subf %48, %51 : vector<16x128xf32>
    %53 = math.exp %52 : vector<16x128xf32>
    %cst_10 = arith.constant dense<0.000000e+00> : vector<128xf32>
    %54 = vector.multi_reduction <add>, %53, %cst_10 [0] : vector<16x128xf32> to vector<128xf32>
    %55 = vector.shape_cast %54 : vector<128xf32> to vector<1x128xf32>
    %56 = tpu.reciprocal %55 {approx = true} : vector<1x128xf32> -> vector<1x128xf32>
    %57 = arith.mulf %55, %56 : vector<1x128xf32>
    %cst_11 = arith.constant 2.000000e+00 : f32
    %58 = vector.broadcast %cst_11 : f32 to vector<1x128xf32>
    %59 = arith.subf %58, %57 : vector<1x128xf32>
    %60 = arith.mulf %56, %59 : vector<1x128xf32>
    %61 = vector.broadcast %60 : vector<1x128xf32> to vector<16x128xf32>
    %62 = arith.mulf %53, %61 : vector<16x128xf32>
    %63 = arith.mulf %62, %46 : vector<16x128xf32>
    %c0_12 = arith.constant 0 : index
    %c0_13 = arith.constant 0 : index
    %64 = vector.load %arg5[%c0_12, %c0_13] : memref<16x1xf32, #tpu.memory_space<vmem>>, vector<16x1xf32>
    %65 = vector.broadcast %64 : vector<16x1xf32> to vector<16x128xf32>
    %66 = arith.mulf %63, %65 : vector<16x128xf32>
    %cst_14 = arith.constant dense<0.000000e+00> : vector<128xf32>
    %67 = vector.multi_reduction <add>, %66, %cst_14 [0] : vector<16x128xf32> to vector<128xf32>
    %68 = vector.shape_cast %67 : vector<128xf32> to vector<1x128xf32>
    %c0_15 = arith.constant 0 : index
    %69 = memref.load %arg6[%c0_15] : memref<1xf32, #tpu.memory_space<smem>>
    %70 = vector.broadcast %69 : f32 to vector<1x128xf32>
    %71 = arith.addf %68, %70 : vector<1x128xf32>
    %c0_16 = arith.constant 0 : index
    %c0_17 = arith.constant 0 : index
    %72 = vector.load %arg7[%c0_16, %c0_17] : memref<1x128xf32, #tpu.memory_space<vmem>>, vector<1x128xf32>
    tpu.vector_store %arg7[%c0_16, %c0_17], %71 {strides = array<i32>} : memref<1x128xf32, #tpu.memory_space<vmem>>, vector<1x128xf32>,
    return
  }
  func.func @transform_0(%arg0: i32) -> (i32, i32) {
    %c0_i32 = arith.constant 0 : i32
    %c0_i32_0 = arith.constant 0 : i32
    return %c0_i32, %arg0 : i32, i32
  }
  func.func @transform_1(%arg0: i32) -> (i32, i32) {
    %c0_i32 = arith.constant 0 : i32
    %c0_i32_0 = arith.constant 0 : i32
    %c0_i32_1 = arith.constant 0 : i32
    return %c0_i32, %c0_i32_0 : i32, i32
  }
  func.func @transform_2(%arg0: i32) -> (i32, i32) {
    %c0_i32 = arith.constant 0 : i32
    %c0_i32_0 = arith.constant 0 : i32
    %c0_i32_1 = arith.constant 0 : i32
    return %c0_i32, %c0_i32_0 : i32, i32
  }
  func.func @transform_3(%arg0: i32) -> (i32, i32) {
    %c0_i32 = arith.constant 0 : i32
    %c0_i32_0 = arith.constant 0 : i32
    %c0_i32_1 = arith.constant 0 : i32
    return %c0_i32, %c0_i32_0 : i32, i32
  }
  func.func @transform_4(%arg0: i32) -> (i32, i32) {
    %c0_i32 = arith.constant 0 : i32
    %c0_i32_0 = arith.constant 0 : i32
    %c0_i32_1 = arith.constant 0 : i32
    return %c0_i32, %c0_i32_0 : i32, i32
  }
  func.func @transform_5(%arg0: i32) -> i32 {
    %c0_i32 = arith.constant 0 : i32
    %c0_i32_0 = arith.constant 0 : i32
    return %c0_i32 : i32
  }
  func.func @transform_6(%arg0: i32) -> (i32, i32) {
    %c0_i32 = arith.constant 0 : i32
    %c0_i32_0 = arith.constant 0 : i32
    return %c0_i32, %arg0 : i32, i32
  }
}

</mosaic_0001>

<llo_original>
// kernel: anfis_forward.1
$region0: #{anfis_forward.1}
  #allocation0 [shape = 'u32[]', space=smem, size = 0x4, offset = 0x4, fixed_abs, tag = 'smem constant byte address 0x4 - core index']
  #allocation1 [shape = 'u32[144,128]{1,0:T(1,128)}', space=vmem, size = 0x12000, scoped, tag = 'internal scratch']
  #allocation2 [shape = 'f32[1]{0:T(128)S(6)}', space=smem, size = 0x200, scoped, tag = 'scoped memory for anfis_forward.1']
  %s0 = inlined_call_operand.vmem [shape: f32[4,128], index: 0, kind: input, shape index: {}]
  %s1 = inlined_call_operand.vmem [shape: f32[16,4], index: 1, kind: input, shape index: {}]
  %s2 = inlined_call_operand.vmem [shape: f32[16,4], index: 2, kind: input, shape index: {}]
  %s3 = inlined_call_operand.vmem [shape: f32[16,16], index: 3, kind: input, shape index: {}]
  %s4 = inlined_call_operand.vmem [shape: f32[16,1], index: 4, kind: input, shape index: {}]
  %s5 = inlined_call_operand.<no memory space> [shape: f32[1], index: 5, kind: input, shape index: {}]
  %s6 = inlined_call_operand.vmem [shape: f32[1,128], index: 6, kind: output, shape index: {}]
  %s7 = sld [smem:[#allocation0]]
  $region34: #{anfis_forward.1} parent=0
    _
  %s9 = ssub.s32 1, %s7
  %s10 = scalar_select 0, %s9, %s7
  %11 = sst [smem:[#allocation2]] %s5
  // Predicated region
  $region2: #{anfis_forward.1} parent=0 // pred_check
    _
  $region3: #{anfis_forward.1} parent=0 // pred_check_branch
    %13 = sbr.rel (0) target = $region5
  $region4: #{anfis_forward.1} parent=0 // pred_region
    _
  $region5: #{anfis_forward.1} parent=0 // pred_fallthru
    _
  // Predicated region
  $region6: #{anfis_forward.1} parent=0 // pred_check
    _
  $region7: #{anfis_forward.1} parent=0 // pred_check_branch
    %15 = sbr.rel (0) target = $region9
  $region8: #{anfis_forward.1} parent=0 // pred_region
    _
  $region9: #{anfis_forward.1} parent=0 // pred_fallthru
    _
  // Predicated region
  $region10: #{anfis_forward.1} parent=0 // pred_check
    _
  $region11: #{anfis_forward.1} parent=0 // pred_check_branch
    %17 = sbr.rel (0) target = $region13
  $region12: #{anfis_forward.1} parent=0 // pred_region
    _
  $region13: #{anfis_forward.1} parent=0 // pred_fallthru
    _
  // Predicated region
  $region14: #{anfis_forward.1} parent=0 // pred_check
    _
  $region15: #{anfis_forward.1} parent=0 // pred_check_branch
    %19 = sbr.rel (0) target = $region17
  $region16: #{anfis_forward.1} parent=0 // pred_region
    _
  $region17: #{anfis_forward.1} parent=0 // pred_fallthru
    _
  // Predicated region
  $region18: #{anfis_forward.1} parent=0 // pred_check
    _
  $region19: #{anfis_forward.1} parent=0 // pred_check_branch
    %21 = sbr.rel (0) target = $region21
  $region20: #{anfis_forward.1} parent=0 // pred_region
    _
  $region21: #{anfis_forward.1} parent=0 // pred_fallthru
    _
  // Predicated region
  $region22: #{anfis_forward.1} parent=0 // pred_check
    _
  $region23: #{anfis_forward.1} parent=0 // pred_check_branch
    %23 = sbr.rel (0) target = $region25
  $region24: #{anfis_forward.1} parent=0 // pred_region
    _
  $region25: #{anfis_forward.1} parent=0 // pred_fallthru
    _
  %v24 = vld [vmem:[%s0] sm:$0xf]
  %v25 = vld [vmem:[%s1] sm:$0xff]
  %v26 = vld [vmem:[%s1 + $0x8] sm:$0xff]
  %v27 = vld [vmem:[%s2] sm:$0xff]
  %v28 = vld [vmem:[%s2 + $0x8] sm:$0xff]
  %v29 = vlaneseq
  %v30 = vshrl.u32 %v29, 7
  %v31 = vsub.s32 0, %v30
  %v32 = vrot.slane %v24, %v31
  %34 = vset.pattern.permute.xlu0 0
  %35 = vperm.xlu0 %34, %v25
  %v36 = vpop.permute.xlu0 %35
  %39 = vset.pattern.permute.xlu0 0
  %40 = vperm.xlu0 %39, %v26
  %v41 = vpop.permute.xlu0 %40
  %v43 = vmul.f32 %v32, %v36
  %v44 = vmul.f32 %v32, %v41
  %46 = vset.pattern.permute.xlu0 0
  %47 = vperm.xlu0 %46, %v27
  %v48 = vpop.permute.xlu0 %47
  %51 = vset.pattern.permute.xlu0 0
  %52 = vperm.xlu0 %51, %v28
  %v53 = vpop.permute.xlu0 %52
  %v55 = vsub.f32 %v43, %v48
  %v56 = vsub.f32 %v44, %v53
  %v57 = vmul.f32 %v55, %v55
  %v58 = vmul.f32 %v56, %v56
  %v59 = vadd.f32 %v57, 0.0
  %v60 = vadd.f32 %v58, 0.0
  %v61 = vlaneseq
  %v62 = vshrl.u32 %v61, 7
  %v63 = vsub.s32 1, %v62
  %v64 = vrot.slane %v24, %v63
  %65 = vset.pattern.permute.xlu0 1
  %66 = vperm.xlu0 %65, %v25
  %v67 = vpop.permute.xlu0 %66
  %69 = vset.pattern.permute.xlu0 1
  %70 = vperm.xlu0 %69, %v26
  %v71 = vpop.permute.xlu0 %70
  %v73 = vmul.f32 %v64, %v67
  %v74 = vmul.f32 %v64, %v71
  %75 = vset.pattern.permute.xlu0 1
  %76 = vperm.xlu0 %75, %v27
  %v77 = vpop.permute.xlu0 %76
  %79 = vset.pattern.permute.xlu0 1
  %80 = vperm.xlu0 %79, %v28
  %v81 = vpop.permute.xlu0 %80
  %v83 = vsub.f32 %v73, %v77
  %v84 = vsub.f32 %v74, %v81
  %v85 = vmul.f32 %v83, %v83
  %v86 = vmul.f32 %v84, %v84
  %v87 = vadd.f32 %v59, %v85
  %v88 = vadd.f32 %v60, %v86
  %v89 = vlaneseq
  %v90 = vshrl.u32 %v89, 7
  %v91 = vsub.s32 2, %v90
  %v92 = vrot.slane %v24, %v91
  %93 = vset.pattern.permute.xlu0 2
  %94 = vperm.xlu0 %93, %v25
  %v95 = vpop.permute.xlu0 %94
  %97 = vset.pattern.permute.xlu0 2
  %98 = vperm.xlu0 %97, %v26
  %v99 = vpop.permute.xlu0 %98
  %v101 = vmul.f32 %v92, %v95
  %v102 = vmul.f32 %v92, %v99
  %103 = vset.pattern.permute.xlu0 2
  %104 = vperm.xlu0 %103, %v27
  %v105 = vpop.permute.xlu0 %104
  %107 = vset.pattern.permute.xlu0 2
  %108 = vperm.xlu0 %107, %v28
  %v109 = vpop.permute.xlu0 %108
  %v111 = vsub.f32 %v101, %v105
  %v112 = vsub.f32 %v102, %v109
  %v113 = vmul.f32 %v111, %v111
  %v114 = vmul.f32 %v112, %v112
  %v115 = vadd.f32 %v87, %v113
  %v116 = vadd.f32 %v88, %v114
  %v117 = vlaneseq
  %v118 = vshrl.u32 %v117, 7
  %v119 = vsub.s32 3, %v118
  %v120 = vrot.slane %v24, %v119
  %121 = vset.pattern.permute.xlu0 3
  %122 = vperm.xlu0 %121, %v25
  %v123 = vpop.permute.xlu0 %122
  %125 = vset.pattern.permute.xlu0 3
  %126 = vperm.xlu0 %125, %v26
  %v127 = vpop.permute.xlu0 %126
  %v129 = vmul.f32 %v120, %v123
  %v130 = vmul.f32 %v120, %v127
  %131 = vset.pattern.permute.xlu0 3
  %132 = vperm.xlu0 %131, %v27
  %v133 = vpop.permute.xlu0 %132
  %135 = vset.pattern.permute.xlu0 3
  %136 = vperm.xlu0 %135, %v28
  %v137 = vpop.permute.xlu0 %136
  %v139 = vsub.f32 %v129, %v133
  %v140 = vsub.f32 %v130, %v137
  %v141 = vmul.f32 %v139, %v139
  %v142 = vmul.f32 %v140, %v140
  %v143 = vadd.f32 %v115, %v141
  %v144 = vadd.f32 %v116, %v142
  %v145 = vmul.f32 %v143, -0.5
  %v146 = vmul.f32 %v144, -0.5
  %v147 = vmul.f32 %v145, 1.442695
  %v148 = vpow.pop %v147
  %v149 = vmul.f32 %v146, 1.442695
  %v150 = vpow.pop %v149
  %v151 = vld [vmem:[%s3] sm:$0xff]
  %v152 = vld [vmem:[%s3 + $0x8] sm:$0xff]
  %vm153 = vcmask 130048
  %v155 = vsel %vm153, %v151, 0
  %v158 = vsel %vm153, %v152, 0
  %160 = vmatprep.subr.mxu0 0.0
  %161 = vmatpush1.msra.mxu0 %v148
  %162 = vmatprep.subr.mxu0 0.0
  %163 = vmatpush1.msra.mxu0 %v150
  %164 = vmatprep.subr.mxu0 0.0
  %165 = vmatpush1.msra.mxu0 0.0
  %166 = vmatprep.subr.mxu0 0.0
  %167 = vmatpush1.msra.mxu0 0.0
  %168 = vmatprep.subr.mxu0 0.0
  %169 = vmatpush1.msra.mxu0 0.0
  %170 = vmatprep.subr.mxu0 0.0
  %171 = vmatpush1.msra.mxu0 0.0
  %172 = vmatprep.subr.mxu0 0.0
  %173 = vmatpush1.msra.mxu0 0.0
  %174 = vmatprep.subr.mxu0 0.0
  %175 = vmatpush1.msra.mxu0 0.0
  %176 = vmatprep.subr.mxu0 0.0
  %177 = vmatpush1.msra.mxu0 0.0
  %178 = vmatprep.subr.mxu0 0.0
  %179 = vmatpush1.msra.mxu0 0.0
  %180 = vmatprep.subr.mxu0 0.0
  %181 = vmatpush1.msra.mxu0 0.0
  %182 = vmatprep.subr.mxu0 0.0
  %183 = vmatpush1.msra.mxu0 0.0
  %184 = vmatprep.subr.mxu0 0.0
  %185 = vmatpush1.msra.mxu0 0.0
  %186 = vmatprep.subr.mxu0 0.0
  %187 = vmatpush1.msra.mxu0 0.0
  %188 = vmatprep.subr.mxu0 0.0
  %189 = vmatpush1.msra.mxu0 0.0
  %190 = vmatprep.subr.mxu0 0.0
  %191 = vmatpush1.msra.mxu0 0.0
  %192 = vmatprep.subr.mxu0 0.0
  %193 = vmatpush1.msra.mxu0 0.0
  %194 = vmatprep.subr.mxu0 0.0
  %195 = vmatpush1.msra.mxu0 0.0
  %196 = vmatprep.subr.mxu0 0.0
  %197 = vmatpush1.msra.mxu0 0.0
  %198 = vmatprep.subr.mxu0 0.0
  %199 = vmatpush1.msra.mxu0 0.0
  %200 = vmatprep.subr.mxu0 0.0
  %201 = vmatpush1.msra.mxu0 0.0
  %202 = vmatprep.subr.mxu0 0.0
  %203 = vmatpush1.msra.mxu0 0.0
  %204 = vmatprep.subr.mxu0 0.0
  %205 = vmatpush1.msra.mxu0 0.0
  %206 = vmatprep.subr.mxu0 0.0
  %207 = vmatpush1.msra.mxu0 0.0
  %208 = vmatprep.subr.mxu0 0.0
  %209 = vmatpush1.msra.mxu0 0.0
  %210 = vmatprep.subr.mxu0 0.0
  %211 = vmatpush1.msra.mxu0 0.0
  %212 = vmatprep.subr.mxu0 0.0
  %213 = vmatpush1.msra.mxu0 0.0
  %214 = vmatprep.subr.mxu0 0.0
  %215 = vmatpush1.msra.mxu0 0.0
  %216 = vmatprep.subr.mxu0 0.0
  %217 = vmatpush1.msra.mxu0 0.0
  %218 = vmatprep.subr.mxu0 0.0
  %219 = vmatpush1.msra.mxu0 0.0
  %220 = vmatprep.subr.mxu0 0.0
  %221 = vmatpush1.msra.mxu0 0.0
  %222 = vmatprep.subr.mxu0 0.0
  %223 = vmatpush1.msra.mxu0 0.0
  %224 = vmatprep.mubr.f32.mxu0 0.0
  %225 = vmatmul.mubr.f32.gmra.mrb[0].mxu0 %v155
  %v226 = vpop.f32.mrb[0].mxu0
  %v227 = vadd.f32 0.0, %v226
  %v228 = vpop.f32.mrb[0].mxu0
  %229 = vmatprep.mubr.f32.mxu0 0.0
  %230 = vmatmul.mubr.f32.gmra.mrb[0].mxu0 %v158
  %v231 = vpop.f32.mrb[0].mxu0
  %v232 = vadd.f32 0.0, %v231
  %v233 = vpop.f32.mrb[0].mxu0
  %234 = vdwg.mxu0
  %v235 = vmax.f32 %v227, %v232
  %v236 = vrot.slane %v235, 4
  %v237 = vmax.f32 %v235, %v236
  %v238 = vrot.slane %v237, 2
  %v239 = vmax.f32 %v237, %v238
  %v240 = vrot.slane %v239, 1
  %v241 = vmax.f32 %v239, %v240
  %v242 = vsub.f32 %v227, %v241
  %v243 = vsub.f32 %v232, %v241
  %v244 = vmul.f32 %v242, 1.442695
  %v245 = vpow.pop %v244
  %v246 = vmul.f32 %v243, 1.442695
  %v247 = vpow.pop %v246
  %v248 = vadd.f32 %v245, %v247
  %v249 = vrot.slane %v248, 4
  %v250 = vadd.f32 %v248, %v249
  %v251 = vrot.slane %v250, 2
  %v252 = vadd.f32 %v250, %v251
  %v253 = vrot.slane %v252, 1
  %v254 = vadd.f32 %v252, %v253
  %v255 = vrcp.pop %v254
  %v256 = vmul.f32 %v254, %v255
  %v257 = vsub.f32 2.0, %v256
  %v258 = vmul.f32 %v255, %v257
  %v259 = vmul.f32 %v245, %v258
  %v260 = vmul.f32 %v247, %v258
  %v261 = vmul.f32 %v259, %v148
  %v262 = vmul.f32 %v260, %v150
  %v263 = vld [vmem:[%s4] sm:$0xff]
  %v264 = vld [vmem:[%s4 + $0x8] sm:$0xff]
  %266 = vset.pattern.permute.xlu0 0
  %267 = vperm.xlu0 %266, %v263
  %v268 = vpop.permute.xlu0 %267
  %271 = vset.pattern.permute.xlu0 0
  %272 = vperm.xlu0 %271, %v264
  %v273 = vpop.permute.xlu0 %272
  %v275 = vmul.f32 %v261, %v268
  %v276 = vmul.f32 %v262, %v273
  %v277 = vadd.f32 %v275, %v276
  %v278 = vrot.slane %v277, 4
  %v279 = vadd.f32 %v277, %v278
  %v280 = vrot.slane %v279, 2
  %v281 = vadd.f32 %v279, %v280
  %v282 = vrot.slane %v281, 1
  %v283 = vadd.f32 %v281, %v282
  %s284 = sld [smem:[#allocation2]]
  %v285 = vstv %s284
  %v286 = vadd.f32 %v283, %v285
  %287 = vst [vmem:[%s6] sm:$0x1] %v286
  // Predicated region
  $region26: #{anfis_forward.1} parent=0 // pred_check
    _
  $region27: #{anfis_forward.1} parent=0 // pred_check_branch
    %289 = sbr.rel (0) target = $region29
  $region28: #{anfis_forward.1} parent=0 // pred_region
    _
  $region29: #{anfis_forward.1} parent=0 // pred_fallthru
    _
  // Predicated region
  $region30: #{anfis_forward.1} parent=0 // pred_check
    _
  $region31: #{anfis_forward.1} parent=0 // pred_check_branch
    %291 = sbr.rel (0) target = $region33
  $region32: #{anfis_forward.1} parent=0 // pred_region
    _
  $region33: #{anfis_forward.1} parent=0 // pred_fallthru
    _

</llo_original>
